<compile_context>
chip_gen: v5e
topology: v5e:2x2
jax: 0.10.0
libtpu: 0.0.40
codegen_flags: <defaults>
</compile_context>

<pallas_src>
import jax
import jax.numpy as jnp
from jax.experimental import pallas as pl
from jax.experimental.pallas import tpu as pltpu

# Shapes implied by the module: MaxPool output length 7 and fc1 in-features 2*7 => conv length 14.
L = 14          # conv input/output sequence length
L_POOL = 7      # length after MaxPool1d(kernel=2, stride=2)
OC = 2          # Conv1d out channels
H1 = 4          # fc1 hidden size
NCLS = 2        # fc2 output classes

BATCH_TILE = 8192   # lanes per grid step (multiple of 128); sweepable 2048..16384
LANE = 128

# Packed-parameter block layout: row starts aligned to sublane multiples of 8, biases in col 14.
P_ROWS, P_COLS = 48, 128
R_TE, R_TO, R_W1, R_W2 = 0, 16, 32, 40
C_BIAS = 14


def smallcnn_kernel(x_ref, p_ref, out_ref):
    f32 = jnp.float32
    x = x_ref[...]                                                 # (L, bt): seq on sublanes, batch on lanes

    # Static slices of the single packed constant block.
    te = p_ref[R_TE:R_TE + OC * L_POOL, 0:L]                       # (14, 14) even pool-tap conv rows
    to = p_ref[R_TO:R_TO + OC * L_POOL, 0:L]                       # (14, 14) odd pool-tap conv rows
    b_pool = p_ref[R_TE:R_TE + OC * L_POOL, C_BIAS:C_BIAS + 1]     # (14, 1) per-channel conv bias
    w1 = p_ref[R_W1:R_W1 + H1, 0:OC * L_POOL]                      # (4, 14)
    b1 = p_ref[R_W1:R_W1 + H1, C_BIAS:C_BIAS + 1]                  # (4, 1)
    w2 = p_ref[R_W2:R_W2 + NCLS, 0:H1]                             # (2, 4)
    b2 = p_ref[R_W2:R_W2 + NCLS, C_BIAS:C_BIAS + 1]                # (2, 1)

    # Conv1d(1->2, k=3, pad=1) + ReLU + MaxPool1d(2) fused:
    # max(relu(a+b), relu(c+b)) == relu(max(a, c) + b) since both pool taps share the channel bias.
    ce = jnp.dot(te, x, preferred_element_type=f32)                # (14, bt)
    co = jnp.dot(to, x, preferred_element_type=f32)                # (14, bt)
    h1 = jnp.maximum(jnp.maximum(ce, co) + b_pool, 0.0)            # pooled ReLU-conv, channel-major rows

    # fc1 + ReLU, fc2.
    h = jnp.maximum(jnp.dot(w1, h1, preferred_element_type=f32) + b1, 0.0)   # (4, bt)
    z = jnp.dot(w2, h, preferred_element_type=f32) + b2                      # (2, bt)

    # 2-class softmax over the class (sublane) axis: explicit pairwise arithmetic, EUP reciprocal.
    z0 = z[0:1, :]
    z1 = z[1:2, :]
    m = jnp.maximum(z0, z1)
    e = jnp.exp(z - m)                                             # (2, bt)
    inv = pl.reciprocal(e[0:1, :] + e[1:2, :], approx=True)        # (1, bt), EUP slot
    out_ref[...] = e * inv                                         # lane-dense (2, bt) store


def make_params(key):
    """Deterministic init mirroring PyTorch default U(-1/sqrt(fan_in), 1/sqrt(fan_in))."""
    ks = jax.random.split(key, 6)

    def u(k, shape, fan_in):
        bound = 1.0 / jnp.sqrt(jnp.float32(fan_in))
        return jax.random.uniform(k, shape, jnp.float32, -bound, bound)

    conv_w = u(ks[0], (OC, 1, 3), 1 * 3)               # torch Conv1d weight (out, in, k)
    conv_b = u(ks[1], (OC,), 1 * 3)
    fc1_w = u(ks[2], (H1, OC * L_POOL), OC * L_POOL)   # torch Linear weight (out, in)
    fc1_b = u(ks[3], (H1,), OC * L_POOL)
    fc2_w = u(ks[4], (NCLS, H1), H1)
    fc2_b = u(ks[5], (NCLS,), H1)
    return conv_w, conv_b, fc1_w, fc1_b, fc2_w, fc2_b


def _toeplitz(w_c):
    """(3,) conv taps -> (L, L) matrix T such that (x @ T) == 'same' Conv1d(pad=1, k=3)."""
    ti = jnp.arange(L)[:, None]
    to = jnp.arange(L)[None, :]
    k = ti - to + 1
    valid = (k >= 0) & (k < 3)
    return jnp.where(valid, w_c[jnp.clip(k, 0, 2)], 0.0).astype(jnp.float32)


def pack_params(params):
    """Fold conv Toeplitz + pool selection + fc weights/biases into one (48, 128) constant block.

    Done once on the host/XLA side (outside the kernel and outside the per-call jit path).
    """
    conv_w, conv_b, fc1_w, fc1_b, fc2_w, fc2_b = params
    # (28, 14): rows 0..13 = channel-0 conv output positions, rows 14..27 = channel 1, in the
    # orientation where conv = t_all @ x with x of shape (L, B).
    t_all = jnp.concatenate(
        [_toeplitz(conv_w[0, 0]).T, _toeplitz(conv_w[1, 0]).T], axis=0)
    r = jnp.arange(OC * L_POOL)                 # pooled row -> (channel, pool index), channel-major
    ch, j = r // L_POOL, r % L_POOL
    te = t_all[ch * L + 2 * j]                  # (14, 14): even pool taps
    to_ = t_all[ch * L + 2 * j + 1]             # (14, 14): odd pool taps
    b_pool = conv_b[ch]                         # (14,): per-channel conv bias

    p = jnp.zeros((P_ROWS, P_COLS), jnp.float32)
    p = p.at[R_TE:R_TE + OC * L_POOL, 0:L].set(te)
    p = p.at[R_TE:R_TE + OC * L_POOL, C_BIAS].set(b_pool.astype(jnp.float32))
    p = p.at[R_TO:R_TO + OC * L_POOL, 0:L].set(to_)
    p = p.at[R_W1:R_W1 + H1, 0:OC * L_POOL].set(fc1_w.astype(jnp.float32))
    p = p.at[R_W1:R_W1 + H1, C_BIAS].set(fc1_b.astype(jnp.float32))
    p = p.at[R_W2:R_W2 + NCLS, 0:H1].set(fc2_w.astype(jnp.float32))
    p = p.at[R_W2:R_W2 + NCLS, C_BIAS].set(fc2_b.astype(jnp.float32))
    return p


def _round_up(n, m):
    return -(-n // m) * m


@jax.jit
def smallcnn_forward(x, packed):
    """x: (B, 1, L) float32 (PyTorch NCL layout). packed: (48,128) param block.
    Returns (B, 2) softmax probabilities."""
    B = x.shape[0]
    xt = x.reshape(B, L).astype(jnp.float32).T           # (L, B): batch on lanes (layout plumbing)
    bt = min(BATCH_TILE, _round_up(B, LANE))             # lane-aligned batch tile
    bp = _round_up(B, bt)
    xt = jnp.pad(xt, ((0, 0), (0, bp - B)))

    out = pl.pallas_call(
        smallcnn_kernel,
        out_shape=jax.ShapeDtypeStruct((NCLS, bp), jnp.float32),
        grid=(bp // bt,),
        in_specs=[
            pl.BlockSpec((L, bt), lambda i: (0, i)),             # x tile (L, bt), default double-buffer
            pl.BlockSpec((P_ROWS, P_COLS), lambda i: (0, 0)),    # packed constants (grid-invariant)
        ],
        out_specs=pl.BlockSpec((NCLS, bt), lambda i: (0, i)),    # lane-dense (2, bt) store
        compiler_params=pltpu.CompilerParams(
            dimension_semantics=("parallel",)),                  # batch axis shards across TCs
    )(xt, packed)
    return out[:, :B].T                                          # back to (B, 2)


def ref_forward(x, params):
    """Pure-JAX reference matching the PyTorch forward exactly."""
    conv_w, conv_b, fc1_w, fc1_b, fc2_w, fc2_b = params
    B = x.shape[0]
    xp = jnp.pad(x, ((0, 0), (0, 0), (1, 1)))
    conv = sum(conv_w[None, :, 0, k, None] * xp[:, :, k:k + L] for k in range(3))
    conv = conv + conv_b[None, :, None]                   # (B, 2, 14)
    conv = jnp.maximum(conv, 0.0)
    pooled = conv.reshape(B, OC, L_POOL, 2).max(axis=-1)  # (B, 2, 7)
    flat = pooled.reshape(B, OC * L_POOL)                 # channel-major, like .view(-1, 2*7)
    h = jnp.maximum(flat @ fc1_w.T + fc1_b, 0.0)
    z = h @ fc2_w.T + fc2_b
    return jax.nn.softmax(z, axis=1)


if __name__ == "__main__":
    key = jax.random.PRNGKey(0)
    pkey, xkey = jax.random.split(key)
    params = make_params(pkey)
    packed = pack_params(params)                                # pack once, reuse every call
    x = jax.random.normal(xkey, (2, 1, L), dtype=jnp.float32)   # (batch=2, channels=1, seq=14)

    out = jax.block_until_ready(smallcnn_forward(x, packed))
    ref = ref_forward(x, params)

    assert out.shape == (2, NCLS)
    # approx=True EUP reciprocal in the softmax => relative error ~1e-4; compare at 2e-3.
    assert jnp.allclose(out, ref, atol=2e-3, rtol=2e-3), (out, ref)
    assert jnp.allclose(out.sum(axis=1), 1.0, atol=2e-3)

    print("KERNEL_OK")
</pallas_src>

<mosaic_0001>
module attributes {stable_mosaic.version = 11 : i64} {
  func.func @smallcnn_kernel(%arg0: i32, %arg1: memref<14x128xf32, #tpu.memory_space<vmem>>, %arg2: memref<48x128xf32, #tpu.memory_space<vmem>>, %arg3: memref<2x128xf32, #tpu.memory_space<vmem>>) attributes {dimension_semantics = [#tpu.dimension_semantics<parallel>], iteration_bounds = array<i64: 1>, scalar_prefetch = 0 : i64, scratch_operands = 0 : i64, tpu.core_type = #tpu.core_type<tc>, window_params = [{transform_indices = @transform_0, window_bounds = array<i64: 14, 128>}, {pipeline_mode = #tpu.pipeline_mode<synchronous>, transform_indices = @transform_1, window_bounds = array<i64: 48, 128>}, {transform_indices = @transform_2, window_bounds = array<i64: 2, 128>}]} {
    %c0 = arith.constant 0 : index
    %c0_0 = arith.constant 0 : index
    %0 = vector.load %arg1[%c0, %c0_0] : memref<14x128xf32, #tpu.memory_space<vmem>>, vector<14x128xf32>
    %c0_1 = arith.constant 0 : index
    %c0_2 = arith.constant 0 : index
    %1 = vector.load %arg2[%c0_1, %c0_2] : memref<48x128xf32, #tpu.memory_space<vmem>>, vector<14x14xf32>
    %c16 = arith.constant 16 : index
    %c0_3 = arith.constant 0 : index
    %2 = vector.load %arg2[%c16, %c0_3] : memref<48x128xf32, #tpu.memory_space<vmem>>, vector<14x14xf32>
    %c0_4 = arith.constant 0 : index
    %c14 = arith.constant 14 : index
    %3 = vector.load %arg2[%c0_4, %c14] : memref<48x128xf32, #tpu.memory_space<vmem>>, vector<14x1xf32>
    %c32 = arith.constant 32 : index
    %c0_5 = arith.constant 0 : index
    %4 = vector.load %arg2[%c32, %c0_5] : memref<48x128xf32, #tpu.memory_space<vmem>>, vector<4x14xf32>
    %c32_6 = arith.constant 32 : index
    %c14_7 = arith.constant 14 : index
    %5 = vector.load %arg2[%c32_6, %c14_7] : memref<48x128xf32, #tpu.memory_space<vmem>>, vector<4x1xf32>
    %c40 = arith.constant 40 : index
    %c0_8 = arith.constant 0 : index
    %6 = vector.load %arg2[%c40, %c0_8] : memref<48x128xf32, #tpu.memory_space<vmem>>, vector<2x4xf32>
    %c40_9 = arith.constant 40 : index
    %c14_10 = arith.constant 14 : index
    %7 = vector.load %arg2[%c40_9, %c14_10] : memref<48x128xf32, #tpu.memory_space<vmem>>, vector<2x1xf32>
    %cst = arith.constant dense<0.000000e+00> : vector<14x128xf32>
    %8 = tpu.matmul %1, %0, %cst {dimension_numbers = #tpu.dot_dimension_numbers<[1], [0], [0], [1], [0, 0, 1, 1], [], []>} : vector<14x14xf32>, vector<14x128xf32>, vector<14x128xf32> -> vector<14x128xf32>
    %cst_11 = arith.constant dense<0.000000e+00> : vector<14x128xf32>
    %9 = tpu.matmul %2, %0, %cst_11 {dimension_numbers = #tpu.dot_dimension_numbers<[1], [0], [0], [1], [0, 0, 1, 1], [], []>} : vector<14x14xf32>, vector<14x128xf32>, vector<14x128xf32> -> vector<14x128xf32>
    %10 = arith.maximumf %8, %9 : vector<14x128xf32>
    %11 = vector.broadcast %3 : vector<14x1xf32> to vector<14x128xf32>
    %12 = arith.addf %10, %11 : vector<14x128xf32>
    %cst_12 = arith.constant 0.000000e+00 : f32
    %13 = vector.broadcast %cst_12 : f32 to vector<14x128xf32>
    %14 = arith.maximumf %12, %13 : vector<14x128xf32>
    %cst_13 = arith.constant dense<0.000000e+00> : vector<4x128xf32>
    %15 = tpu.matmul %4, %14, %cst_13 {dimension_numbers = #tpu.dot_dimension_numbers<[1], [0], [0], [1], [0, 0, 1, 1], [], []>} : vector<4x14xf32>, vector<14x128xf32>, vector<4x128xf32> -> vector<4x128xf32>
    %16 = vector.broadcast %5 : vector<4x1xf32> to vector<4x128xf32>
    %17 = arith.addf %15, %16 : vector<4x128xf32>
    %cst_14 = arith.constant 0.000000e+00 : f32
    %18 = vector.broadcast %cst_14 : f32 to vector<4x128xf32>
    %19 = arith.maximumf %17, %18 : vector<4x128xf32>
    %cst_15 = arith.constant dense<0.000000e+00> : vector<2x128xf32>
    %20 = tpu.matmul %6, %19, %cst_15 {dimension_numbers = #tpu.dot_dimension_numbers<[1], [0], [0], [1], [0, 0, 1, 1], [], []>} : vector<2x4xf32>, vector<4x128xf32>, vector<2x128xf32> -> vector<2x128xf32>
    %21 = vector.broadcast %7 : vector<2x1xf32> to vector<2x128xf32>
    %22 = arith.addf %20, %21 : vector<2x128xf32>
    %23 = vector.extract_strided_slice %22 {offsets = [0, 0], sizes = [1, 128], strides = [1, 1]} : vector<2x128xf32> to vector<1x128xf32>
    %24 = vector.extract_strided_slice %22 {offsets = [1, 0], sizes = [1, 128], strides = [1, 1]} : vector<2x128xf32> to vector<1x128xf32>
    %25 = arith.maximumf %23, %24 : vector<1x128xf32>
    %26 = vector.broadcast %25 : vector<1x128xf32> to vector<2x128xf32>
    %27 = arith.subf %22, %26 : vector<2x128xf32>
    %28 = math.exp %27 : vector<2x128xf32>
    %29 = vector.extract_strided_slice %28 {offsets = [0, 0], sizes = [1, 128], strides = [1, 1]} : vector<2x128xf32> to vector<1x128xf32>
    %30 = vector.extract_strided_slice %28 {offsets = [1, 0], sizes = [1, 128], strides = [1, 1]} : vector<2x128xf32> to vector<1x128xf32>
    %31 = arith.addf %29, %30 : vector<1x128xf32>
    %32 = tpu.reciprocal %31 {approx = true} : vector<1x128xf32> -> vector<1x128xf32>
    %33 = vector.broadcast %32 : vector<1x128xf32> to vector<2x128xf32>
    %34 = arith.mulf %28, %33 : vector<2x128xf32>
    %c0_16 = arith.constant 0 : index
    %c0_17 = arith.constant 0 : index
    %35 = vector.load %arg3[%c0_16, %c0_17] : memref<2x128xf32, #tpu.memory_space<vmem>>, vector<2x128xf32>
    tpu.vector_store %arg3[%c0_16, %c0_17], %34 {strides = array<i32>} : memref<2x128xf32, #tpu.memory_space<vmem>>, vector<2x128xf32>,
    return
  }
  func.func @transform_0(%arg0: i32) -> (i32, i32) {
    %c0_i32 = arith.constant 0 : i32
    %c0_i32_0 = arith.constant 0 : i32
    return %c0_i32, %arg0 : i32, i32
  }
  func.func @transform_1(%arg0: i32) -> (i32, i32) {
    %c0_i32 = arith.constant 0 : i32
    %c0_i32_0 = arith.constant 0 : i32
    %c0_i32_1 = arith.constant 0 : i32
    return %c0_i32, %c0_i32_0 : i32, i32
  }
  func.func @transform_2(%arg0: i32) -> (i32, i32) {
    %c0_i32 = arith.constant 0 : i32
    %c0_i32_0 = arith.constant 0 : i32
    return %c0_i32, %arg0 : i32, i32
  }
}

</mosaic_0001>

<llo_original>
// kernel: smallcnn_forward.1
$region0: #{smallcnn_forward.1}
  #allocation0 [shape = 'u32[]', space=smem, size = 0x4, offset = 0x4, fixed_abs, tag = 'smem constant byte address 0x4 - core index']
  #allocation1 [shape = 'u32[72,128]{1,0:T(1,128)}', space=vmem, size = 0x9000, scoped, tag = 'internal scratch']
  %s0 = inlined_call_operand.vmem [shape: f32[14,128], index: 0, kind: input, shape index: {}]
  %s1 = inlined_call_operand.vmem [shape: f32[48,128], index: 1, kind: input, shape index: {}]
  %s2 = inlined_call_operand.vmem [shape: f32[2,128], index: 2, kind: output, shape index: {}]
  %s3 = sld [smem:[#allocation0]]
  $region18: #{smallcnn_forward.1} parent=0
    _
  %s5 = ssub.s32 1, %s3
  %s6 = scalar_select 0, %s5, %s3
  // Predicated region
  $region2: #{smallcnn_forward.1} parent=0 // pred_check
    _
  $region3: #{smallcnn_forward.1} parent=0 // pred_check_branch
    %8 = sbr.rel (0) target = $region5
  $region4: #{smallcnn_forward.1} parent=0 // pred_region
    _
  $region5: #{smallcnn_forward.1} parent=0 // pred_fallthru
    _
  // Predicated region
  $region6: #{smallcnn_forward.1} parent=0 // pred_check
    _
  $region7: #{smallcnn_forward.1} parent=0 // pred_check_branch
    %10 = sbr.rel (0) target = $region9
  $region8: #{smallcnn_forward.1} parent=0 // pred_region
    _
  $region9: #{smallcnn_forward.1} parent=0 // pred_fallthru
    _
  %v11 = vld [vmem:[%s0] sm:$0xff]
  %v12 = vld [vmem:[%s0 + $0x8] sm:$0x3f]
  %v13 = vld [vmem:[%s1] sm:$0xff]
  %v14 = vld [vmem:[%s1 + $0x8] sm:$0x3f]
  %v15 = vld [vmem:[%s1 + $0x10] sm:$0xff]
  %v16 = vld [vmem:[%s1 + $0x18] sm:$0x3f]
  %v17 = vld [vmem:[%s1 + $0x20] sm:$0xf]
  %v18 = vld [vmem:[%s1 + $0x28] sm:$0x3]
  %vm19 = vcmask 113664
  %v21 = vsel %vm19, %v13, 0
  %v24 = vsel %vm19, %v14, 0
  %vm26 = vcmask 1045504
  %v28 = vsel %vm26, %v12, 0
  %30 = vmatpush.msra.mxu0 0.0
  %31 = vmatpush.msra.mxu0 0.0
  %32 = vmatpush.msra.mxu0 0.0
  %33 = vmatpush.msra.mxu0 0.0
  %34 = vmatpush.msra.mxu0 0.0
  %35 = vmatpush.msra.mxu0 0.0
  %36 = vmatpush.msra.mxu0 0.0
  %37 = vmatpush.msra.mxu0 0.0
  %38 = vmatpush.msra.mxu0 0.0
  %39 = vmatpush.msra.mxu0 0.0
  %40 = vmatpush.msra.mxu0 0.0
  %41 = vmatpush.msra.mxu0 0.0
  %42 = vmatpush.msra.mxu0 0.0
  %43 = vmatpush.msra.mxu0 0.0
  %44 = vmatpush.msra.mxu0 %v28
  %45 = vmatpush.msra.mxu0 %v11
  %46 = vmatmul.f32.gmra.mxu0 %v21
  %v47 = vpop.f32.mrf.mxu0
  %v48 = vadd.f32 0.0, %v47
  %49 = vmatmul.f32.gmra.mxu0 %v24
  %v50 = vpop.f32.mrf.mxu0
  %v51 = vadd.f32 0.0, %v50
  %52 = vdwg.mxu0
  %v54 = vsel %vm19, %v15, 0
  %v57 = vsel %vm19, %v16, 0
  %59 = vmatpush.msra.mxu0 0.0
  %60 = vmatpush.msra.mxu0 0.0
  %61 = vmatpush.msra.mxu0 0.0
  %62 = vmatpush.msra.mxu0 0.0
  %63 = vmatpush.msra.mxu0 0.0
  %64 = vmatpush.msra.mxu0 0.0
  %65 = vmatpush.msra.mxu0 0.0
  %66 = vmatpush.msra.mxu0 0.0
  %67 = vmatpush.msra.mxu0 0.0
  %68 = vmatpush.msra.mxu0 0.0
  %69 = vmatpush.msra.mxu0 0.0
  %70 = vmatpush.msra.mxu0 0.0
  %71 = vmatpush.msra.mxu0 0.0
  %72 = vmatpush.msra.mxu0 0.0
  %73 = vmatpush.msra.mxu0 %v28
  %74 = vmatpush.msra.mxu0 %v11
  %75 = vmatmul.f32.gmra.mxu0 %v54
  %v76 = vpop.f32.mrf.mxu0
  %v77 = vadd.f32 0.0, %v76
  %78 = vmatmul.f32.gmra.mxu0 %v57
  %v79 = vpop.f32.mrf.mxu0
  %v80 = vadd.f32 0.0, %v79
  %81 = vdwg.mxu0
  %v82 = vmax.f32 %v48, %v77
  %v83 = vmax.f32 %v51, %v80
  %84 = vset.pattern.permute.xlu0 14
  %85 = vperm.xlu0 %84, %v13
  %v86 = vpop.permute.xlu0 %85
  %88 = vset.pattern.permute.xlu0 14
  %89 = vperm.xlu0 %88, %v14
  %v90 = vpop.permute.xlu0 %89
  %v92 = vadd.f32 %v82, %v86
  %v93 = vadd.f32 %v83, %v90
  %v94 = vmax.f32 %v92, 0.0
  %v95 = vmax.f32 %v93, 0.0
  %97 = vset.pattern.permute.xlu0 14
  %98 = vperm.xlu0 %97, %v17
  %v99 = vpop.permute.xlu0 %98
  %v101 = vsel %vm19, %v17, 0
  %v104 = vsel %vm26, %v95, 0
  %106 = vmatpush.msra.mxu0 0.0
  %107 = vmatpush.msra.mxu0 0.0
  %108 = vmatpush.msra.mxu0 0.0
  %109 = vmatpush.msra.mxu0 0.0
  %110 = vmatpush.msra.mxu0 0.0
  %111 = vmatpush.msra.mxu0 0.0
  %112 = vmatpush.msra.mxu0 0.0
  %113 = vmatpush.msra.mxu0 0.0
  %114 = vmatpush.msra.mxu0 0.0
  %115 = vmatpush.msra.mxu0 0.0
  %116 = vmatpush.msra.mxu0 0.0
  %117 = vmatpush.msra.mxu0 0.0
  %118 = vmatpush.msra.mxu0 0.0
  %119 = vmatpush.msra.mxu0 0.0
  %120 = vmatpush.msra.mxu0 %v104
  %121 = vmatpush.msra.mxu0 %v94
  %122 = vmatmul.f32.gmra.mxu0 %v101
  %v123 = vpop.f32.mrf.mxu0
  %v124 = vadd.f32 %v99, %v123
  %125 = vdwg.mxu0
  %v126 = vmax.f32 %v124, 0.0
  %128 = vset.pattern.permute.xlu0 14
  %129 = vperm.xlu0 %128, %v18
  %v130 = vpop.permute.xlu0 %129
  %vm132 = vcmask 31744
  %v133 = vsel %vm132, %v18, 0
  %vm135 = vcmask 1043456
  %v137 = vsel %vm135, %v126, 0
  %139 = vmatpush.msra.mxu0 0.0
  %140 = vmatpush.msra.mxu0 0.0
  %141 = vmatpush.msra.mxu0 0.0
  %142 = vmatpush.msra.mxu0 0.0
  %143 = vmatpush.msra.mxu0 0.0
  %144 = vmatpush.msra.mxu0 0.0
  %145 = vmatpush.msra.mxu0 0.0
  %146 = vmatpush.msra.mxu0 0.0
  %147 = vmatpush.msra.mxu0 0.0
  %148 = vmatpush.msra.mxu0 0.0
  %149 = vmatpush.msra.mxu0 0.0
  %150 = vmatpush.msra.mxu0 0.0
  %151 = vmatpush.msra.mxu0 0.0
  %152 = vmatpush.msra.mxu0 0.0
  %153 = vmatpush.msra.mxu0 0.0
  %154 = vmatpush.msra.mxu0 %v137
  %155 = vmatmul.f32.gmra.mxu0 %v133
  %v156 = vpop.f32.mrf.mxu0
  %v157 = vadd.f32 %v130, %v156
  %158 = vdwg.mxu0
  %v160 = vrot.slane %v157, 1
  %v162 = vmax.f32 %v157, %v160
  %v163 = vperm.slane %v162, 0
  %v164 = vsub.f32 %v157, %v163
  %v165 = vmul.f32 %v164, 1.442695
  %v166 = vpow.pop %v165
  %v168 = vrot.slane %v166, 1
  %v170 = vadd.f32 %v166, %v168
  %v171 = vrcp.pop %v170
  %v172 = vperm.slane %v171, 0
  %v173 = vmul.f32 %v166, %v172
  %174 = vst [vmem:[%s2] sm:$0x3] %v173
  // Predicated region
  $region10: #{smallcnn_forward.1} parent=0 // pred_check
    _
  $region11: #{smallcnn_forward.1} parent=0 // pred_check_branch
    %176 = sbr.rel (0) target = $region13
  $region12: #{smallcnn_forward.1} parent=0 // pred_region
    _
  $region13: #{smallcnn_forward.1} parent=0 // pred_fallthru
    _
  // Predicated region
  $region14: #{smallcnn_forward.1} parent=0 // pred_check
    _
  $region15: #{smallcnn_forward.1} parent=0 // pred_check_branch
    %178 = sbr.rel (0) target = $region17
  $region16: #{smallcnn_forward.1} parent=0 // pred_region
    _
  $region17: #{smallcnn_forward.1} parent=0 // pred_fallthru
    _

</llo_original>
